<compile_context>
chip_gen: v5e
topology: v5e:2x2
jax: 0.10.0
libtpu: 0.0.40
codegen_flags: <defaults>
</compile_context>

<pallas_src>
import jax
import jax.numpy as jnp
from jax.experimental import pallas as pl
from jax.experimental.pallas import tpu as pltpu


def _convbnrelu_res1d_kernel(x_ref, w1_ref, b1_ref, w2_ref, b2_ref, o_ref):
    """One (C, tile_n) column block of the fused residual pointwise MLP.

    x_ref : (C, TN)    f32   input block (N on lanes -> lane-dense)
    w1_ref: (Cmid, C)  bf16  BN1-folded conv1 weight
    b1_ref: (Cmid, 1)  f32   BN1-folded conv1 bias
    w2_ref: (C, Cmid)  bf16  BN2-folded conv2 weight
    b2_ref: (C, 1)     f32   BN2-folded conv2 bias
    o_ref : (C, TN)    f32
    """
    # net1: conv1d(k=1) + BN (folded) + ReLU.  bf16 MXU, f32 accumulation.
    h = jnp.dot(w1_ref[...].astype(jnp.bfloat16),
                x_ref[...].astype(jnp.bfloat16),
                preferred_element_type=jnp.float32)
    h = jnp.maximum(h + b1_ref[...], 0.0)

    # net2: conv1d(k=1) + BN (folded), residual add, final ReLU.  The residual
    # is re-read from the VMEM ref at the use point (not kept live across both
    # matmuls) to keep peak vreg pressure low for large tiles.
    y = jnp.dot(w2_ref[...].astype(jnp.bfloat16),
                h.astype(jnp.bfloat16),
                preferred_element_type=jnp.float32)
    o_ref[...] = jnp.maximum(y + b2_ref[...] + x_ref[...], 0.0).astype(o_ref.dtype)


def _round_up(v, m):
    return (v + m - 1) // m * m


def _round_down(v, m):
    return max(v // m, 1) * m


def conv_bn_relu_res1d(x_ncl, params, *, tile_n=4096, eps=1e-5):
    """Fused ConvBNReLURes1D forward.  x_ncl: (B, C, N) f32 -> (B, C, N) f32."""
    B, C, N = x_ncl.shape

    # ---- fold eval-mode BatchNorm into the pointwise conv weights/biases ----
    def fold(w, b, gamma, beta, mean, var):
        a = gamma / jnp.sqrt(var + eps)              # (Cout,)
        return w * a[:, None], a * (b - mean) + beta

    w1e, b1e = fold(params["w1"], params["b1"], params["bn1_gamma"],
                    params["bn1_beta"], params["bn1_mean"], params["bn1_var"])
    w2e, b2e = fold(params["w2"], params["b2"], params["bn2_gamma"],
                    params["bn2_beta"], params["bn2_mean"], params["bn2_var"])
    Cmid = w1e.shape[0]

    w1_bf = w1e.astype(jnp.bfloat16)                 # (Cmid, C)
    w2_bf = w2e.astype(jnp.bfloat16)                 # (C, Cmid)
    b1r = b1e.astype(jnp.float32).reshape(Cmid, 1)
    b2r = b2e.astype(jnp.float32).reshape(C, 1)

    # ---- per-chip VMEM budget (v7x: 64 MiB, v5e/v6e: 128 MiB) ---------------
    try:
        vmem_cap = int(pltpu.get_tpu_info().vmem_capacity_bytes)
    except Exception:
        vmem_cap = 64 * 1024 * 1024                  # safe (v7x-sized) default
    budget = int(0.70 * vmem_cap)

    # Bytes per lane column:
    #   x block f32 x2 (dbuf)   : 8*C
    #   out block f32 x2 (dbuf) : 8*C
    #   temporaries (x_bf16 2*C, h f32 4*Cmid, h_bf16 2*Cmid, y f32 4*C)
    per_col = 22 * C + 6 * Cmid
    weight_bytes = 2 * (2 * C * Cmid * 2 + (C + Cmid) * 4)   # worst case: dbuf
    margin = 4 * 1024 * 1024                                 # Mosaic scratch
    avail = max(budget - weight_bytes - margin, per_col * 128)
    max_tn = _round_down(avail // per_col, 128)

    # ---- lane-dense column tile; partial last block, no wrapper pad/slice ---
    tile_n_eff = min(_round_up(tile_n, 128), max_tn, _round_up(N, 128))
    if B == 1 and N > 128:
        # v7x has 2 TensorCores: make sure the only useful parallel axis has
        # at least 2 steps so both cores get work.
        tile_n_eff = min(tile_n_eff, _round_up(pl.cdiv(N, 2), 128))
    tile_n_eff = max(tile_n_eff, 128)

    grid = (B, pl.cdiv(N, tile_n_eff))
    vmem_limit = int(min(budget, vmem_cap))

    x_f32 = x_ncl.astype(jnp.float32)

    def build(single_buffer_weights):
        wkw = ({"pipeline_mode": pl.Buffered(1)}
               if single_buffer_weights else {})
        grid_spec = pl.GridSpec(
            grid=grid,
            in_specs=[
                # x: batch dim squeezed out, (C, tile_n) block, N on lanes.
                pl.BlockSpec((None, C, tile_n_eff), lambda b, j: (b, 0, j)),
                # Constant operands (same block every grid step) -> single
                # buffer them so VMEM headroom goes to the column tile.
                pl.BlockSpec((Cmid, C), lambda b, j: (0, 0), **wkw),
                pl.BlockSpec((Cmid, 1), lambda b, j: (0, 0), **wkw),
                pl.BlockSpec((C, Cmid), lambda b, j: (0, 0), **wkw),
                pl.BlockSpec((C, 1), lambda b, j: (0, 0), **wkw),
            ],
            out_specs=pl.BlockSpec((None, C, tile_n_eff),
                                   lambda b, j: (b, 0, j)),
        )
        return pl.pallas_call(
            _convbnrelu_res1d_kernel,
            out_shape=jax.ShapeDtypeStruct((B, C, N), jnp.float32),
            grid_spec=grid_spec,
            compiler_params=pltpu.CompilerParams(
                dimension_semantics=("parallel", "parallel"),
                vmem_limit_bytes=vmem_limit,
            ),
        )

    try:
        return build(True)(x_f32, w1_bf, b1r, w2_bf, b2r)
    except Exception:
        # Fallback for builds where pipeline_mode=pl.Buffered(1) is not
        # accepted on top-level pallas_call BlockSpecs; default buffering.
        return build(False)(x_f32, w1_bf, b1r, w2_bf, b2r)


def _reference(x_ncl, params, eps=1e-5):
    """Pure-JAX f32 reference mirroring the PyTorch forward (eval-mode BN)."""
    def bn(z, g, b, m, v):  # z: (B, C, N)
        return g[None, :, None] * (z - m[None, :, None]) / \
            jnp.sqrt(v[None, :, None] + eps) + b[None, :, None]

    def conv1x1(z, w, b):   # w: (Cout, Cin)
        return jnp.einsum("oc,bcn->bon", w, z) + b[None, :, None]

    h = conv1x1(x_ncl, params["w1"], params["b1"])
    h = jnp.maximum(bn(h, params["bn1_gamma"], params["bn1_beta"],
                       params["bn1_mean"], params["bn1_var"]), 0.0)
    y = conv1x1(h, params["w2"], params["b2"])
    y = bn(y, params["bn2_gamma"], params["bn2_beta"],
           params["bn2_mean"], params["bn2_var"])
    return jnp.maximum(y + x_ncl, 0.0)


def _init_params(key, channel, res_expansion=1.0):
    cmid = int(channel * res_expansion)
    ks = jax.random.split(key, 12)
    return {
        # Conv1d weights are (Cout, Cin, K=1) in PyTorch; K axis dropped.
        "w1": 0.2 * jax.random.normal(ks[0], (cmid, channel), jnp.float32),
        "b1": 0.1 * jax.random.normal(ks[1], (cmid,), jnp.float32),
        "w2": 0.2 * jax.random.normal(ks[2], (channel, cmid), jnp.float32),
        "b2": 0.1 * jax.random.normal(ks[3], (channel,), jnp.float32),
        # BatchNorm affine + (non-trivial) running stats, eval-mode semantics.
        "bn1_gamma": 1.0 + 0.1 * jax.random.normal(ks[4], (cmid,), jnp.float32),
        "bn1_beta": 0.05 * jax.random.normal(ks[5], (cmid,), jnp.float32),
        "bn1_mean": 0.1 * jax.random.normal(ks[6], (cmid,), jnp.float32),
        "bn1_var": jax.random.uniform(ks[7], (cmid,), jnp.float32, 0.5, 1.5),
        "bn2_gamma": 1.0 + 0.1 * jax.random.normal(ks[8], (channel,), jnp.float32),
        "bn2_beta": 0.05 * jax.random.normal(ks[9], (channel,), jnp.float32),
        "bn2_mean": 0.1 * jax.random.normal(ks[10], (channel,), jnp.float32),
        "bn2_var": jax.random.uniform(ks[11], (channel,), jnp.float32, 0.5, 1.5),
    }


if __name__ == "__main__":
    # Small NCL input consistent with the module; N=300 deliberately not a
    # multiple of 128 to exercise the partial-last-block (masked store) path.
    B, C, N = 2, 16, 300
    key = jax.random.PRNGKey(0)
    kx, kp = jax.random.split(key)
    x = jax.random.normal(kx, (B, C, N), jnp.float32)
    params = _init_params(kp, C, res_expansion=1.0)

    out = conv_bn_relu_res1d(x, params, tile_n=4096)
    out = jax.block_until_ready(out)

    ref = _reference(x, params)
    assert out.shape == (B, C, N)
    err = float(jnp.max(jnp.abs(out - ref)))
    # bf16 matmul operands (f32 accumulation) -> relaxed tolerance vs f32 ref.
    assert jnp.allclose(out, ref, atol=5e-2, rtol=5e-2), f"max err {err}"
    print("KERNEL_OK")
</pallas_src>

<mosaic_0001>
module attributes {stable_mosaic.version = 11 : i64} {
  func.func @_convbnrelu_res1d_kernel(%arg0: i32, %arg1: i32, %arg2: memref<1x16x384xf32, #tpu.memory_space<vmem>>, %arg3: memref<16x16xbf16, #tpu.memory_space<vmem>>, %arg4: memref<16x1xf32, #tpu.memory_space<vmem>>, %arg5: memref<16x16xbf16, #tpu.memory_space<vmem>>, %arg6: memref<16x1xf32, #tpu.memory_space<vmem>>, %arg7: memref<1x16x384xf32, #tpu.memory_space<vmem>>) attributes {dimension_semantics = [#tpu.dimension_semantics<parallel>, #tpu.dimension_semantics<parallel>], iteration_bounds = array<i64: 2, 1>, scalar_prefetch = 0 : i64, scratch_operands = 0 : i64, tpu.core_type = #tpu.core_type<tc>, window_params = [{transform_indices = @transform_0, window_bounds = array<i64: 1, 16, 384>}, {pipeline_mode = #tpu.pipeline_mode<synchronous>, transform_indices = @transform_1, window_bounds = array<i64: 16, 16>}, {pipeline_mode = #tpu.pipeline_mode<synchronous>, transform_indices = @transform_2, window_bounds = array<i64: 16, 1>}, {pipeline_mode = #tpu.pipeline_mode<synchronous>, transform_indices = @transform_3, window_bounds = array<i64: 16, 16>}, {pipeline_mode = #tpu.pipeline_mode<synchronous>, transform_indices = @transform_4, window_bounds = array<i64: 16, 1>}, {transform_indices = @transform_5, window_bounds = array<i64: 1, 16, 384>}]} {
    %c0 = arith.constant 0 : index
    %c0_0 = arith.constant 0 : index
    %0 = vector.load %arg3[%c0, %c0_0] : memref<16x16xbf16, #tpu.memory_space<vmem>>, vector<16x16xbf16>
    %c0_1 = arith.constant 0 : index
    %c0_2 = arith.constant 0 : index
    %c0_3 = arith.constant 0 : index
    %1 = vector.load %arg2[%c0_1, %c0_2, %c0_3] : memref<1x16x384xf32, #tpu.memory_space<vmem>>, vector<1x16x384xf32>
    %2 = vector.shape_cast %1 : vector<1x16x384xf32> to vector<16x384xf32>
    %3 = arith.truncf %2 : vector<16x384xf32> to vector<16x384xbf16>
    %cst = arith.constant dense<0.000000e+00> : vector<16x384xf32>
    %4 = tpu.matmul %0, %3, %cst {dimension_numbers = #tpu.dot_dimension_numbers<[1], [0], [0], [1], [0, 0, 1, 1], [], []>} : vector<16x16xbf16>, vector<16x384xbf16>, vector<16x384xf32> -> vector<16x384xf32>
    %c0_4 = arith.constant 0 : index
    %c0_5 = arith.constant 0 : index
    %5 = vector.load %arg4[%c0_4, %c0_5] : memref<16x1xf32, #tpu.memory_space<vmem>>, vector<16x1xf32>
    %6 = vector.broadcast %5 : vector<16x1xf32> to vector<16x384xf32>
    %7 = arith.addf %4, %6 : vector<16x384xf32>
    %cst_6 = arith.constant 0.000000e+00 : f32
    %8 = vector.broadcast %cst_6 : f32 to vector<16x384xf32>
    %9 = arith.maximumf %7, %8 : vector<16x384xf32>
    %c0_7 = arith.constant 0 : index
    %c0_8 = arith.constant 0 : index
    %10 = vector.load %arg5[%c0_7, %c0_8] : memref<16x16xbf16, #tpu.memory_space<vmem>>, vector<16x16xbf16>
    %11 = arith.truncf %9 : vector<16x384xf32> to vector<16x384xbf16>
    %cst_9 = arith.constant dense<0.000000e+00> : vector<16x384xf32>
    %12 = tpu.matmul %10, %11, %cst_9 {dimension_numbers = #tpu.dot_dimension_numbers<[1], [0], [0], [1], [0, 0, 1, 1], [], []>} : vector<16x16xbf16>, vector<16x384xbf16>, vector<16x384xf32> -> vector<16x384xf32>
    %c0_10 = arith.constant 0 : index
    %c0_11 = arith.constant 0 : index
    %13 = vector.load %arg6[%c0_10, %c0_11] : memref<16x1xf32, #tpu.memory_space<vmem>>, vector<16x1xf32>
    %14 = vector.broadcast %13 : vector<16x1xf32> to vector<16x384xf32>
    %15 = arith.addf %12, %14 : vector<16x384xf32>
    %c0_12 = arith.constant 0 : index
    %c0_13 = arith.constant 0 : index
    %c0_14 = arith.constant 0 : index
    %16 = vector.load %arg2[%c0_12, %c0_13, %c0_14] : memref<1x16x384xf32, #tpu.memory_space<vmem>>, vector<1x16x384xf32>
    %17 = vector.shape_cast %16 : vector<1x16x384xf32> to vector<16x384xf32>
    %18 = arith.addf %15, %17 : vector<16x384xf32>
    %cst_15 = arith.constant 0.000000e+00 : f32
    %19 = vector.broadcast %cst_15 : f32 to vector<16x384xf32>
    %20 = arith.maximumf %18, %19 : vector<16x384xf32>
    %c0_16 = arith.constant 0 : index
    %c0_17 = arith.constant 0 : index
    %c0_18 = arith.constant 0 : index
    %21 = vector.load %arg7[%c0_16, %c0_17, %c0_18] : memref<1x16x384xf32, #tpu.memory_space<vmem>>, vector<1x16x384xf32>
    %22 = vector.shape_cast %21 : vector<1x16x384xf32> to vector<16x384xf32>
    %23 = vector.shape_cast %20 : vector<16x384xf32> to vector<1x16x384xf32>
    tpu.vector_store %arg7[%c0_16, %c0_17, %c0_18], %23 {strides = array<i32>} : memref<1x16x384xf32, #tpu.memory_space<vmem>>, vector<1x16x384xf32>,
    return
  }
  func.func @transform_0(%arg0: i32, %arg1: i32) -> (i32, i32, i32) {
    %c0_i32 = arith.constant 0 : i32
    %c0_i32_0 = arith.constant 0 : i32
    return %arg0, %c0_i32, %arg1 : i32, i32, i32
  }
  func.func @transform_1(%arg0: i32, %arg1: i32) -> (i32, i32) {
    %c0_i32 = arith.constant 0 : i32
    %c0_i32_0 = arith.constant 0 : i32
    %c0_i32_1 = arith.constant 0 : i32
    return %c0_i32, %c0_i32_0 : i32, i32
  }
  func.func @transform_2(%arg0: i32, %arg1: i32) -> (i32, i32) {
    %c0_i32 = arith.constant 0 : i32
    %c0_i32_0 = arith.constant 0 : i32
    %c0_i32_1 = arith.constant 0 : i32
    return %c0_i32, %c0_i32_0 : i32, i32
  }
  func.func @transform_3(%arg0: i32, %arg1: i32) -> (i32, i32) {
    %c0_i32 = arith.constant 0 : i32
    %c0_i32_0 = arith.constant 0 : i32
    %c0_i32_1 = arith.constant 0 : i32
    return %c0_i32, %c0_i32_0 : i32, i32
  }
  func.func @transform_4(%arg0: i32, %arg1: i32) -> (i32, i32) {
    %c0_i32 = arith.constant 0 : i32
    %c0_i32_0 = arith.constant 0 : i32
    %c0_i32_1 = arith.constant 0 : i32
    return %c0_i32, %c0_i32_0 : i32, i32
  }
  func.func @transform_5(%arg0: i32, %arg1: i32) -> (i32, i32, i32) {
    %c0_i32 = arith.constant 0 : i32
    %c0_i32_0 = arith.constant 0 : i32
    return %arg0, %c0_i32, %arg1 : i32, i32, i32
  }
}

module attributes {stable_mosaic.version = 11 : i64} {
  func.func @_convbnrelu_res1d_kernel(%arg0: i32, %arg1: i32, %arg2: memref<1x16x384xf32, #tpu.memory_space<vmem>>, %arg3: memref<16x16xbf16, #tpu.memory_space<vmem>>, %arg4: memref<16x1xf32, #tpu.memory_space<vmem>>, %arg5: memref<16x16xbf16, #tpu.memory_space<vmem>>, %arg6: memref<16x1xf32, #tpu.memory_space<vmem>>, %arg7: memref<1x16x384xf32, #tpu.memory_space<vmem>>) attributes {dimension_semantics = [#tpu.dimension_semantics<parallel>, #tpu.dimension_semantics<parallel>], iteration_bounds = array<i64: 2, 1>, scalar_prefetch = 0 : i64, scratch_operands = 0 : i64, tpu.core_type = #tpu.core_type<tc>, window_params = [{transform_indices = @transform_0, window_bounds = array<i64: 1, 16, 384>}, {pipeline_mode = #tpu.pipeline_mode<synchronous>, transform_indices = @transform_1, window_bounds = array<i64: 16, 16>}, {pipeline_mode = #tpu.pipeline_mode<synchronous>, transform_indices = @transform_2, window_bounds = array<i64: 16, 1>}, {pipeline_mode = #tpu.pipeline_mode<synchronous>, transform_indices = @transform_3, window_bounds = array<i64: 16, 16>}, {pipeline_mode = #tpu.pipeline_mode<synchronous>, transform_indices = @transform_4, window_bounds = array<i64: 16, 1>}, {transform_indices = @transform_5, window_bounds = array<i64: 1, 16, 384>}]} {
    %c0 = arith.constant 0 : index
    %c0_0 = arith.constant 0 : index
    %0 = vector.load %arg3[%c0, %c0_0] : memref<16x16xbf16, #tpu.memory_space<vmem>>, vector<16x16xbf16>
    %c0_1 = arith.constant 0 : index
    %c0_2 = arith.constant 0 : index
    %c0_3 = arith.constant 0 : index
    %1 = vector.load %arg2[%c0_1, %c0_2, %c0_3] : memref<1x16x384xf32, #tpu.memory_space<vmem>>, vector<1x16x384xf32>
    %2 = vector.shape_cast %1 : vector<1x16x384xf32> to vector<16x384xf32>
    %3 = arith.truncf %2 : vector<16x384xf32> to vector<16x384xbf16>
    %cst = arith.constant dense<0.000000e+00> : vector<16x384xf32>
    %4 = tpu.matmul %0, %3, %cst {dimension_numbers = #tpu.dot_dimension_numbers<[1], [0], [0], [1], [0, 0, 1, 1], [], []>} : vector<16x16xbf16>, vector<16x384xbf16>, vector<16x384xf32> -> vector<16x384xf32>
    %c0_4 = arith.constant 0 : index
    %c0_5 = arith.constant 0 : index
    %5 = vector.load %arg4[%c0_4, %c0_5] : memref<16x1xf32, #tpu.memory_space<vmem>>, vector<16x1xf32>
    %6 = vector.broadcast %5 : vector<16x1xf32> to vector<16x384xf32>
    %7 = arith.addf %4, %6 : vector<16x384xf32>
    %cst_6 = arith.constant 0.000000e+00 : f32
    %8 = vector.broadcast %cst_6 : f32 to vector<16x384xf32>
    %9 = arith.maximumf %7, %8 : vector<16x384xf32>
    %c0_7 = arith.constant 0 : index
    %c0_8 = arith.constant 0 : index
    %10 = vector.load %arg5[%c0_7, %c0_8] : memref<16x16xbf16, #tpu.memory_space<vmem>>, vector<16x16xbf16>
    %11 = arith.truncf %9 : vector<16x384xf32> to vector<16x384xbf16>
    %cst_9 = arith.constant dense<0.000000e+00> : vector<16x384xf32>
    %12 = tpu.matmul %10, %11, %cst_9 {dimension_numbers = #tpu.dot_dimension_numbers<[1], [0], [0], [1], [0, 0, 1, 1], [], []>} : vector<16x16xbf16>, vector<16x384xbf16>, vector<16x384xf32> -> vector<16x384xf32>
    %c0_10 = arith.constant 0 : index
    %c0_11 = arith.constant 0 : index
    %13 = vector.load %arg6[%c0_10, %c0_11] : memref<16x1xf32, #tpu.memory_space<vmem>>, vector<16x1xf32>
    %14 = vector.broadcast %13 : vector<16x1xf32> to vector<16x384xf32>
    %15 = arith.addf %12, %14 : vector<16x384xf32>
    %c0_12 = arith.constant 0 : index
    %c0_13 = arith.constant 0 : index
    %c0_14 = arith.constant 0 : index
    %16 = vector.load %arg2[%c0_12, %c0_13, %c0_14] : memref<1x16x384xf32, #tpu.memory_space<vmem>>, vector<1x16x384xf32>
    %17 = vector.shape_cast %16 : vector<1x16x384xf32> to vector<16x384xf32>
    %18 = arith.addf %15, %17 : vector<16x384xf32>
    %cst_15 = arith.constant 0.000000e+00 : f32
    %19 = vector.broadcast %cst_15 : f32 to vector<16x384xf32>
    %20 = arith.maximumf %18, %19 : vector<16x384xf32>
    %c0_16 = arith.constant 0 : index
    %c0_17 = arith.constant 0 : index
    %c0_18 = arith.constant 0 : index
    %21 = vector.load %arg7[%c0_16, %c0_17, %c0_18] : memref<1x16x384xf32, #tpu.memory_space<vmem>>, vector<1x16x384xf32>
    %22 = vector.shape_cast %21 : vector<1x16x384xf32> to vector<16x384xf32>
    %23 = vector.shape_cast %20 : vector<16x384xf32> to vector<1x16x384xf32>
    tpu.vector_store %arg7[%c0_16, %c0_17, %c0_18], %23 {strides = array<i32>} : memref<1x16x384xf32, #tpu.memory_space<vmem>>, vector<1x16x384xf32>,
    return
  }
  func.func @transform_0(%arg0: i32, %arg1: i32) -> (i32, i32, i32) {
    %c0_i32 = arith.constant 0 : i32
    %c0_i32_0 = arith.constant 0 : i32
    return %arg0, %c0_i32, %arg1 : i32, i32, i32
  }
  func.func @transform_1(%arg0: i32, %arg1: i32) -> (i32, i32) {
    %c0_i32 = arith.constant 0 : i32
    %c0_i32_0 = arith.constant 0 : i32
    %c0_i32_1 = arith.constant 0 : i32
    return %c0_i32, %c0_i32_0 : i32, i32
  }
  func.func @transform_2(%arg0: i32, %arg1: i32) -> (i32, i32) {
    %c0_i32 = arith.constant 0 : i32
    %c0_i32_0 = arith.constant 0 : i32
    %c0_i32_1 = arith.constant 0 : i32
    return %c0_i32, %c0_i32_0 : i32, i32
  }
  func.func @transform_3(%arg0: i32, %arg1: i32) -> (i32, i32) {
    %c0_i32 = arith.constant 0 : i32
    %c0_i32_0 = arith.constant 0 : i32
    %c0_i32_1 = arith.constant 0 : i32
    return %c0_i32, %c0_i32_0 : i32, i32
  }
  func.func @transform_4(%arg0: i32, %arg1: i32) -> (i32, i32) {
    %c0_i32 = arith.constant 0 : i32
    %c0_i32_0 = arith.constant 0 : i32
    %c0_i32_1 = arith.constant 0 : i32
    return %c0_i32, %c0_i32_0 : i32, i32
  }
  func.func @transform_5(%arg0: i32, %arg1: i32) -> (i32, i32, i32) {
    %c0_i32 = arith.constant 0 : i32
    %c0_i32_0 = arith.constant 0 : i32
    return %arg0, %c0_i32, %arg1 : i32, i32, i32
  }
}

</mosaic_0001>

<llo_original>
// kernel: tpu_custom_call.1
$region0: #{tpu_custom_call.1}
  #allocation0 [shape = 'u32[]', space=smem, size = 0x4, offset = 0x4, fixed_abs, tag = 'smem constant byte address 0x4 - core index']
  #allocation1 [shape = 'u32[72,128]{1,0:T(1,128)}', space=vmem, size = 0x9000, scoped, tag = 'internal scratch']
  %s0 = inlined_call_operand.hbm [shape: f32[2,16,300], index: 0, kind: input, shape index: {}]
  %s1 = inlined_call_operand.vmem [shape: bf16[16,16], index: 1, kind: input, shape index: {}]
  %s2 = inlined_call_operand.vmem [shape: f32[16,1], index: 2, kind: input, shape index: {}]
  %s3 = inlined_call_operand.vmem [shape: bf16[16,16], index: 3, kind: input, shape index: {}]
  %s4 = inlined_call_operand.vmem [shape: f32[16,1], index: 4, kind: input, shape index: {}]
  %s5 = inlined_call_operand.hbm [shape: f32[2,16,300], index: 5, kind: output, shape index: {}]
  %s6 = sld [smem:[#allocation0]]
  $region57: #{tpu_custom_call.1} parent=0
    _
  %s8 = ssub.s32 1, %s6
  %s9 = scalar_select 0, %s8, %s6
  $region1: #{tpu_custom_call.1} parent=0
    #allocation2 [shape = 'u8[49152]{0}', space=vmem, size = 0xc000, scoped, tag = 'input window, operand 0']
    #allocation3 [shape = 's32[2]{0}', space=sflag, size = 0x8, scoped, tag = 'scoped memory for tpu_custom_call.1']
    #allocation4 [shape = 's32[2]{0}', space=sflag, size = 0x8, scoped, tag = 'scoped memory for tpu_custom_call.1']
    #allocation5 [shape = 'u8[49152]{0}', space=vmem, size = 0xc000, scoped, tag = 'output window, operand 0']
    %10 = vsyncpa [#allocation3], 0
    %s11 = scalar_lea.sflag [#allocation3], 1
    %12 = vsyncpa %s11, 0
    %13 = vsyncpa [#allocation4], 0
    %s14 = scalar_lea.sflag [#allocation4], 1
    %15 = vsyncpa %s14, 0
    loop: start=0, step=1, limit=4
    $region2: #{tpu_custom_call.1} parent=1 // loop_pre_header
      _
    $region3: #{tpu_custom_call.1} parent=1 // loop_header
      %s17 = sphi 0, %s21
      %p18 = scmp.ge.s32.totalorder %s17, 4
      %s24 = sphi 0, %s36
      %s25 = sphi 0, %s32
      %s26 = sphi 0, %s24
      %s27 = sphi 0, %s25
      %s28 = sphi 0, %s26
      %s29 = sphi 0, %s27
      %s41 = sphi 0, %s43
      %s44 = sphi 0, %s41
      %s45 = sphi 0, %s44
      %s61 = sphi 0, %s45
      %s65 = sphi 0, %s65
      %s67 = sphi 0, %s65
      %s68 = sphi 0, %s67
      %s82 = sphi 0, %s68
      %s86 = sphi 0, %s86
      %s88 = sphi 0, %s86
      %s89 = sphi 0, %s88
      %s103 = sphi 0, %s89
      %s107 = sphi 0, %s107
      %s109 = sphi 0, %s107
      %s110 = sphi 0, %s109
      %s124 = sphi 0, %s110
      %s128 = sphi 0, %s128
      %s130 = sphi 0, %s128
      %s131 = sphi 0, %s130
      %s145 = sphi 0, %s131
      %s153 = sphi 0, %s155
      %s156 = sphi 0, %s153
      %s157 = sphi 0, %s156
      %s173 = sphi 0, %s157
    $region4: #{tpu_custom_call.1} parent=1 // loop_header_branch
      %20 = sbr.rel (%p18) target = $region8
    $region5: #{tpu_custom_call.1} parent=1 // loop_body
      %s22 = ssub.s32 %s17, 1
      %s23 = ssub.s32 %s17, 2
      %s30 = sadd.s32 1, %s25
      %p31 = scmp.ge.s32.totalorder %s30, 1
      %s32 = scalar_select %p31, 0, %s30
      %s33 = sadd.s32 1, %s24
      %s34 = scalar_select %p31, %s33, %s24
      %p35 = scmp.ge.s32.totalorder %s34, 2
      %s36 = scalar_select %p35, 0, %s34
      %s37 = ssub.s32 %s24, %s36
      %s38 = ssub.s32 %s25, %s32
      %s39 = sor.u32 %s37, %s38
      %p40 = scmp.eq.s32.totalorder %s39, 0
      %s42 = sadd.s32 %s41, 1
      %s43 = scalar_select %p40, %s41, %s42
      %p46 = pneg %p40
      %p47 = scmp.eq.s32.totalorder %s17, 1
      %p48 = por %p46, %p47
      %p49 = scmp.ne.s32.totalorder %s41, %s44
      %p50 = scmp.eq.s32.totalorder %s17, 0
      %p51 = por %p49, %p50
      %p52 = scmp.ne.s32.totalorder %s41, %s44
      %p53 = scmp.eq.s32.totalorder %s22, 1
      %p54 = por %p52, %p53
      %p55 = scmp.ne.s32.totalorder %s44, %s45
      %p56 = scmp.eq.s32.totalorder %s22, 0
      %p57 = por %p55, %p56
      %p58 = scmp.ne.s32.totalorder %s44, %s45
      %p59 = scmp.eq.s32.totalorder %s23, 1
      %p60 = por %p58, %p59
      %p62 = scmp.ne.s32.totalorder %s45, %s61
      %p63 = scmp.eq.s32.totalorder %s23, 0
      %p64 = por %p62, %p63
      %s66 = sadd.s32 %s65, 1
      %p69 = scmp.eq.s32.totalorder %s17, 1
      %p70 = scmp.ne.s32.totalorder %s65, %s67
      %p71 = scmp.eq.s32.totalorder %s17, 0
      %p72 = por %p70, %p71
      %p73 = scmp.ne.s32.totalorder %s65, %s67
      %p74 = scmp.eq.s32.totalorder %s22, 1
      %p75 = por %p73, %p74
      %p76 = scmp.ne.s32.totalorder %s67, %s68
      %p77 = scmp.eq.s32.totalorder %s22, 0
      %p78 = por %p76, %p77
      %p79 = scmp.ne.s32.totalorder %s67, %s68
      %p80 = scmp.eq.s32.totalorder %s23, 1
      %p81 = por %p79, %p80
      %p83 = scmp.ne.s32.totalorder %s68, %s82
      %p84 = scmp.eq.s32.totalorder %s23, 0
      %p85 = por %p83, %p84
      %s87 = sadd.s32 %s86, 1
      %p90 = scmp.eq.s32.totalorder %s17, 1
      %p91 = scmp.ne.s32.totalorder %s86, %s88
      %p92 = scmp.eq.s32.totalorder %s17, 0
      %p93 = por %p91, %p92
      %p94 = scmp.ne.s32.totalorder %s86, %s88
      %p95 = scmp.eq.s32.totalorder %s22, 1
      %p96 = por %p94, %p95
      %p97 = scmp.ne.s32.totalorder %s88, %s89
      %p98 = scmp.eq.s32.totalorder %s22, 0
      %p99 = por %p97, %p98
      %p100 = scmp.ne.s32.totalorder %s88, %s89
      %p101 = scmp.eq.s32.totalorder %s23, 1
      %p102 = por %p100, %p101
      %p104 = scmp.ne.s32.totalorder %s89, %s103
      %p105 = scmp.eq.s32.totalorder %s23, 0
      %p106 = por %p104, %p105
      %s108 = sadd.s32 %s107, 1
      %p111 = scmp.eq.s32.totalorder %s17, 1
      %p112 = scmp.ne.s32.totalorder %s107, %s109
      %p113 = scmp.eq.s32.totalorder %s17, 0
      %p114 = por %p112, %p113
      %p115 = scmp.ne.s32.totalorder %s107, %s109
      %p116 = scmp.eq.s32.totalorder %s22, 1
      %p117 = por %p115, %p116
      %p118 = scmp.ne.s32.totalorder %s109, %s110
      %p119 = scmp.eq.s32.totalorder %s22, 0
      %p120 = por %p118, %p119
      %p121 = scmp.ne.s32.totalorder %s109, %s110
      %p122 = scmp.eq.s32.totalorder %s23, 1
      %p123 = por %p121, %p122
      %p125 = scmp.ne.s32.totalorder %s110, %s124
      %p126 = scmp.eq.s32.totalorder %s23, 0
      %p127 = por %p125, %p126
      %s129 = sadd.s32 %s128, 1
      %p132 = scmp.eq.s32.totalorder %s17, 1
      %p133 = scmp.ne.s32.totalorder %s128, %s130
      %p134 = scmp.eq.s32.totalorder %s17, 0
      %p135 = por %p133, %p134
      %p136 = scmp.ne.s32.totalorder %s128, %s130
      %p137 = scmp.eq.s32.totalorder %s22, 1
      %p138 = por %p136, %p137
      %p139 = scmp.ne.s32.totalorder %s130, %s131
      %p140 = scmp.eq.s32.totalorder %s22, 0
      %p141 = por %p139, %p140
      %p142 = scmp.ne.s32.totalorder %s130, %s131
      %p143 = scmp.eq.s32.totalorder %s23, 1
      %p144 = por %p142, %p143
      %p146 = scmp.ne.s32.totalorder %s131, %s145
      %p147 = scmp.eq.s32.totalorder %s23, 0
      %p148 = por %p146, %p147
      %s149 = ssub.s32 %s24, %s36
      %s150 = ssub.s32 %s25, %s32
      %s151 = sor.u32 %s149, %s150
      %p152 = scmp.eq.s32.totalorder %s151, 0
      %s154 = sadd.s32 %s153, 1
      %s155 = scalar_select %p152, %s153, %s154
      %p158 = pneg %p152
      %p159 = scmp.eq.s32.totalorder %s17, 1
      %p160 = por %p158, %p159
      %p161 = scmp.ne.s32.totalorder %s153, %s156
      %p162 = scmp.eq.s32.totalorder %s17, 0
      %p163 = por %p161, %p162
      %p164 = scmp.ne.s32.totalorder %s153, %s156
      %p165 = scmp.eq.s32.totalorder %s22, 1
      %p166 = por %p164, %p165
      %p167 = scmp.ne.s32.totalorder %s156, %s157
      %p168 = scmp.eq.s32.totalorder %s22, 0
      %p169 = por %p167, %p168
      %p170 = scmp.ne.s32.totalorder %s156, %s157
      %p171 = scmp.eq.s32.totalorder %s23, 1
      %p172 = por %p170, %p171
      %p174 = scmp.ne.s32.totalorder %s157, %s173
      %p175 = scmp.eq.s32.totalorder %s23, 0
      %p176 = por %p174, %p175
      %p177 = scmp.le.s32.totalorder 1, %s17
      %p178 = scmp.lt.s32.totalorder %s17, 3
      %p179 = pnand %p177, %p178
      %p180 = pneg %p179
      // Predicated region
      $region9: #{tpu_custom_call.1} parent=5 // pred_check
        _
      $region10: #{tpu_custom_call.1} parent=5 // pred_check_branch
        %182 = sbr.rel (%p179) target = $region12
      $region11: #{tpu_custom_call.1} parent=5 // pred_region
        %s183 = ssub.s32 %s17, 1
        // Predicated region
        $region13: #{tpu_custom_call.1} parent=11 // pred_check
          %p184 = pneg %p78
        $region14: #{tpu_custom_call.1} parent=11 // pred_check_branch
          %186 = sbr.rel (%p184) target = $region16
        $region15: #{tpu_custom_call.1} parent=11 // pred_region
          _
        $region16: #{tpu_custom_call.1} parent=11 // pred_fallthru
          _
        // Predicated region
        $region17: #{tpu_custom_call.1} parent=11 // pred_check
          %p187 = pneg %p99
        $region18: #{tpu_custom_call.1} parent=11 // pred_check_branch
          %189 = sbr.rel (%p187) target = $region20
        $region19: #{tpu_custom_call.1} parent=11 // pred_region
          _
        $region20: #{tpu_custom_call.1} parent=11 // pred_fallthru
          _
        // Predicated region
        $region21: #{tpu_custom_call.1} parent=11 // pred_check
          %p190 = pneg %p120
        $region22: #{tpu_custom_call.1} parent=11 // pred_check_branch
          %192 = sbr.rel (%p190) target = $region24
        $region23: #{tpu_custom_call.1} parent=11 // pred_region
          _
        $region24: #{tpu_custom_call.1} parent=11 // pred_fallthru
          _
        // Predicated region
        $region25: #{tpu_custom_call.1} parent=11 // pred_check
          %p193 = pneg %p141
        $region26: #{tpu_custom_call.1} parent=11 // pred_check_branch
          %195 = sbr.rel (%p193) target = $region28
        $region27: #{tpu_custom_call.1} parent=11 // pred_region
          _
        $region28: #{tpu_custom_call.1} parent=11 // pred_fallthru
          _
      $region12: #{tpu_custom_call.1} parent=5 // pred_fallthru
        _
      %p196 = scmp.lt.s32.totalorder %s17, 2
      // Predicated region
      $region29: #{tpu_custom_call.1} parent=5 // pred_check
        %p197 = pneg %p196
      $region30: #{tpu_custom_call.1} parent=5 // pred_check_branch
        %199 = sbr.rel (%p197) target = $region32
      $region31: #{tpu_custom_call.1} parent=5 // pred_region
        // Predicated region
        $region33: #{tpu_custom_call.1} parent=31 // pred_check
          %p200 = pneg %p51
        $region34: #{tpu_custom_call.1} parent=31 // pred_check_branch
          %202 = sbr.rel (%p200) target = $region36
        $region35: #{tpu_custom_call.1} parent=31 // pred_region
          %s203 = sand.u32 %s41, 1
          %s204 = scalar_lea.sflag [#allocation3], %s203
          %s205 = sand.u32 %s41, 1
          %s206 = smul.addr %s205, 48
          %s207 = scalar_lea.vmem [#allocation2], %s206
          %s208 = smul.u32 3, %s25
          %210 = vsyncadd %s204, 0
          %s211 = smul.addr %s24, 6
          %s212 = sadd.s32 %s208, %s211
          %s213 = smul.addr %s212, 8
          %s214 = scalar_lea.hbm %s0, %s213
          %s215 = sshll.u32 %s214, 4
          %s216 = int_to_ptr.hbm [resolvable:$true] %s215
          %s217 = sshll.u32 %s207, 4
          %s218 = int_to_ptr.vmem [resolvable:$true] %s217
          %223 = dma.hbm_to_vmem [thread:$0]  %s216, 768, %s218, %s204, 384, 384, 24
        $region36: #{tpu_custom_call.1} parent=31 // pred_fallthru
          _
      $region32: #{tpu_custom_call.1} parent=5 // pred_fallthru
        _
      %p224 = scmp.le.s32.totalorder 1, %s17
      %p225 = scmp.lt.s32.totalorder %s17, 3
      %p226 = pnand %p224, %p225
      %p227 = pneg %p226
      // Predicated region
      $region37: #{tpu_custom_call.1} parent=5 // pred_check
        _
      $region38: #{tpu_custom_call.1} parent=5 // pred_check_branch
        %229 = sbr.rel (%p226) target = $region40
      $region39: #{tpu_custom_call.1} parent=5 // pred_region
        %s230 = ssub.s32 %s17, 1
        %s231 = sand.u32 %s44, 1
        %s232 = scalar_lea.sflag [#allocation3], %s231
        %s233 = sand.u32 %s44, 1
        %s234 = smul.addr %s233, 48
        %s235 = scalar_lea.vmem [#allocation2], %s234
        // Predicated region
        $region41: #{tpu_custom_call.1} parent=39 // pred_check
          %p236 = pneg %p57
        $region42: #{tpu_custom_call.1} parent=39 // pred_check_branch
          %238 = sbr.rel (%p236) target = $region44
        $region43: #{tpu_custom_call.1} parent=39 // pred_region
          %240 = dma.done %s232, 768
        $region44: #{tpu_custom_call.1} parent=39 // pred_fallthru
          _
        %s241 = sand.u32 %s44, 1
        %s242 = scalar_lea.sflag [#allocation3], %s241
        %s243 = sand.u32 %s44, 1
        %s244 = smul.addr %s243, 48
        %s245 = scalar_lea.vmem [#allocation2], %s244
        %p246 = pneg %p57
        %p247 = pneg %p54
        %p248 = pneg %p78
        %p249 = pneg %p75
        %p250 = pneg %p99
        %p251 = pneg %p96
        %p252 = pneg %p120
        %p253 = pneg %p117
        %p254 = pneg %p141
        %p255 = pneg %p138
        %p256 = pneg %p169
        %p257 = pneg %p166
        %s258 = sand.u32 %s156, 1
        %s259 = scalar_lea.sflag [#allocation4], %s258
        %s260 = sand.u32 %s156, 1
        %s261 = smul.addr %s260, 48
        %s262 = scalar_lea.vmem [#allocation5], %s261
        %s263 = smul.u32 3, %s27
        %s264 = smul.u32 3, %s27
        %v266 = vld [vmem:[%s1] sm:$0xf]
        %v267 = vld [vmem:[%s1 + $0x4] sm:$0xf]
        %v268 = vld [vmem:[%s235] sm:$0xff]
        %v269 = vld [vmem:[%s235 + $0x8] sm:$0xff]
        %v270 = vld [vmem:[%s235 + $0x10] sm:$0xff]
        %v271 = vld [vmem:[%s235 + $0x18] sm:$0xff]
        %v272 = vld [vmem:[%s235 + $0x20] sm:$0xff]
        %v273 = vld [vmem:[%s235 + $0x28] sm:$0xff]
        %v274 = vpack.c.bf16 %v271, %v268
        %v275 = vpack.c.bf16 %v272, %v269
        %v276 = vpack.c.bf16 %v273, %v270
        %v277 = vld [vmem:[%s2] sm:$0xff]
        %v278 = vld [vmem:[%s2 + $0x8] sm:$0xff]
        %280 = vset.pattern.permute.xlu0 0
        %281 = vperm.xlu0 %280, %v277
        %v282 = vpop.permute.xlu0 %281
        %285 = vset.pattern.permute.xlu0 0
        %286 = vperm.xlu0 %285, %v278
        %v287 = vpop.permute.xlu0 %286
        %v291 = vunpack.c.l.b16 %v266
        %v292 = vunpack.c.l.b16 %v267
        %v293 = vpack.c.b16 %v292, %v291
        %vm294 = vcmask 130048
        %v296 = vsel %vm294, %v293, 0
        %298 = vmatpush.bf16.msra.mxu0 0
        %299 = vmatpush.bf16.msra.mxu0 0
        %300 = vmatpush.bf16.msra.mxu0 0
        %301 = vmatpush.bf16.msra.mxu0 0
        %302 = vmatpush.bf16.msra.mxu0 0
        %303 = vmatpush.bf16.msra.mxu0 0
        %304 = vmatpush.bf16.msra.mxu0 0
        %305 = vmatpush.bf16.msra.mxu0 %v274
        %306 = vmatmul.bf16.gmra.mxu0 %v296
        %v307 = vpop.f32.mrf.mxu0
        %v308 = vadd.f32 %v282, %v307
        %v309 = vpop.f32.mrf.mxu0
        %v310 = vadd.f32 %v287, %v309
        %311 = vdwg.mxu0
        %312 = vmatpush.bf16.msra.mxu0 0
        %313 = vmatpush.bf16.msra.mxu0 0
        %314 = vmatpush.bf16.msra.mxu0 0
        %315 = vmatpush.bf16.msra.mxu0 0
        %316 = vmatpush.bf16.msra.mxu0 0
        %317 = vmatpush.bf16.msra.mxu0 0
        %318 = vmatpush.bf16.msra.mxu0 0
        %319 = vmatpush.bf16.msra.mxu0 %v275
        %320 = vmatmul.bf16.gmra.mxu0 %v296
        %v321 = vpop.f32.mrf.mxu0
        %v322 = vadd.f32 %v282, %v321
        %v323 = vpop.f32.mrf.mxu0
        %v324 = vadd.f32 %v287, %v323
        %325 = vdwg.mxu0
        %326 = vmatpush.bf16.msra.mxu0 0
        %327 = vmatpush.bf16.msra.mxu0 0
        %328 = vmatpush.bf16.msra.mxu0 0
        %329 = vmatpush.bf16.msra.mxu0 0
        %330 = vmatpush.bf16.msra.mxu0 0
        %331 = vmatpush.bf16.msra.mxu0 0
        %332 = vmatpush.bf16.msra.mxu0 0
        %333 = vmatpush.bf16.msra.mxu0 %v276
        %334 = vmatmul.bf16.gmra.mxu0 %v296
        %v335 = vpop.f32.mrf.mxu0
        %v336 = vadd.f32 %v282, %v335
        %v337 = vpop.f32.mrf.mxu0
        %v338 = vadd.f32 %v287, %v337
        %339 = vdwg.mxu0
        %v340 = vmax.f32 %v308, 0.0
        %v341 = vmax.f32 %v322, 0.0
        %v342 = vmax.f32 %v336, 0.0
        %v343 = vmax.f32 %v310, 0.0
        %v344 = vmax.f32 %v324, 0.0
        %v345 = vmax.f32 %v338, 0.0
        %v346 = vld [vmem:[%s3] sm:$0xf]
        %v347 = vld [vmem:[%s3 + $0x4] sm:$0xf]
        %v348 = vpack.c.bf16 %v343, %v340
        %v349 = vpack.c.bf16 %v344, %v341
        %v350 = vpack.c.bf16 %v345, %v342
        %v351 = vld [vmem:[%s4] sm:$0xff]
        %v352 = vld [vmem:[%s4 + $0x8] sm:$0xff]
        %354 = vset.pattern.permute.xlu0 0
        %355 = vperm.xlu0 %354, %v351
        %v356 = vpop.permute.xlu0 %355
        %359 = vset.pattern.permute.xlu0 0
        %360 = vperm.xlu0 %359, %v352
        %v361 = vpop.permute.xlu0 %360
        %v365 = vunpack.c.l.b16 %v346
        %v366 = vunpack.c.l.b16 %v347
        %v367 = vpack.c.b16 %v366, %v365
        %v369 = vsel %vm294, %v367, 0
        %371 = vmatpush.bf16.msra.mxu0 0
        %372 = vmatpush.bf16.msra.mxu0 0
        %373 = vmatpush.bf16.msra.mxu0 0
        %374 = vmatpush.bf16.msra.mxu0 0
        %375 = vmatpush.bf16.msra.mxu0 0
        %376 = vmatpush.bf16.msra.mxu0 0
        %377 = vmatpush.bf16.msra.mxu0 0
        %378 = vmatpush.bf16.msra.mxu0 %v348
        %379 = vmatmul.bf16.gmra.mxu0 %v369
        %v380 = vpop.f32.mrf.mxu0
        %v381 = vadd.f32 %v356, %v380
        %v382 = vpop.f32.mrf.mxu0
        %v383 = vadd.f32 %v361, %v382
        %384 = vdwg.mxu0
        %385 = vmatpush.bf16.msra.mxu0 0
        %386 = vmatpush.bf16.msra.mxu0 0
        %387 = vmatpush.bf16.msra.mxu0 0
        %388 = vmatpush.bf16.msra.mxu0 0
        %389 = vmatpush.bf16.msra.mxu0 0
        %390 = vmatpush.bf16.msra.mxu0 0
        %391 = vmatpush.bf16.msra.mxu0 0
        %392 = vmatpush.bf16.msra.mxu0 %v349
        %393 = vmatmul.bf16.gmra.mxu0 %v369
        %v394 = vpop.f32.mrf.mxu0
        %v395 = vadd.f32 %v356, %v394
        %v396 = vpop.f32.mrf.mxu0
        %v397 = vadd.f32 %v361, %v396
        %398 = vdwg.mxu0
        %399 = vmatpush.bf16.msra.mxu0 0
        %400 = vmatpush.bf16.msra.mxu0 0
        %401 = vmatpush.bf16.msra.mxu0 0
        %402 = vmatpush.bf16.msra.mxu0 0
        %403 = vmatpush.bf16.msra.mxu0 0
        %404 = vmatpush.bf16.msra.mxu0 0
        %405 = vmatpush.bf16.msra.mxu0 0
        %406 = vmatpush.bf16.msra.mxu0 %v350
        %407 = vmatmul.bf16.gmra.mxu0 %v369
        %v408 = vpop.f32.mrf.mxu0
        %v409 = vadd.f32 %v356, %v408
        %v410 = vpop.f32.mrf.mxu0
        %v411 = vadd.f32 %v361, %v410
        %412 = vdwg.mxu0
        %v413 = vadd.f32 %v381, %v268
        %v414 = vadd.f32 %v395, %v269
        %v415 = vadd.f32 %v409, %v270
        %v416 = vadd.f32 %v383, %v271
        %v417 = vadd.f32 %v397, %v272
        %v418 = vadd.f32 %v411, %v273
        %v419 = vmax.f32 %v413, 0.0
        %v420 = vmax.f32 %v414, 0.0
        %v421 = vmax.f32 %v415, 0.0
        %v422 = vmax.f32 %v416, 0.0
        %v423 = vmax.f32 %v417, 0.0
        %v424 = vmax.f32 %v418, 0.0
        %425 = vst [vmem:[%s262] sm:$0xff] %v419
        %426 = vst [vmem:[%s262 + $0x8] sm:$0xff] %v420
        %427 = vst [vmem:[%s262 + $0x10] sm:$0xff] %v421
        %428 = vst [vmem:[%s262 + $0x18] sm:$0xff] %v422
        %429 = vst [vmem:[%s262 + $0x20] sm:$0xff] %v423
        %430 = vst [vmem:[%s262 + $0x28] sm:$0xff] %v424
        %s431 = sand.u32 %s156, 1
        %s432 = scalar_lea.sflag [#allocation4], %s431
        %s433 = sand.u32 %s156, 1
        %s434 = smul.addr %s433, 48
        %s435 = scalar_lea.vmem [#allocation5], %s434
        // Predicated region
        $region45: #{tpu_custom_call.1} parent=39 // pred_check
          %p436 = pneg %p166
        $region46: #{tpu_custom_call.1} parent=39 // pred_check_branch
          %438 = sbr.rel (%p436) target = $region48
        $region47: #{tpu_custom_call.1} parent=39 // pred_region
          %s439 = smul.u32 3, %s27
          %441 = vsyncadd %s432, 0
          %s442 = smul.addr %s26, 6
          %s443 = sadd.s32 %s439, %s442
          %s444 = smul.addr %s443, 8
          %s445 = scalar_lea.hbm %s5, %s444
          %s446 = sshll.u32 %s435, 4
          %s447 = int_to_ptr.vmem [resolvable:$true] %s446
          %s448 = sshll.u32 %s445, 4
          %s449 = int_to_ptr.hbm [resolvable:$true] %s448
          %454 = dma.vmem_to_hbm [thread:$0]  %s447, 768, %s449, %s432, 384, 384, 24
        $region48: #{tpu_custom_call.1} parent=39 // pred_fallthru
          _
      $region40: #{tpu_custom_call.1} parent=5 // pred_fallthru
        _
      %p455 = scmp.le.s32.totalorder 2, %s17
      // Predicated region
      $region49: #{tpu_custom_call.1} parent=5 // pred_check
        %p456 = pneg %p455
      $region50: #{tpu_custom_call.1} parent=5 // pred_check_branch
        %458 = sbr.rel (%p456) target = $region52
      $region51: #{tpu_custom_call.1} parent=5 // pred_region
        %s459 = ssub.s32 %s17, 2
        // Predicated region
        $region53: #{tpu_custom_call.1} parent=51 // pred_check
          %p460 = pneg %p172
        $region54: #{tpu_custom_call.1} parent=51 // pred_check_branch
          %462 = sbr.rel (%p460) target = $region56
        $region55: #{tpu_custom_call.1} parent=51 // pred_region
          %s463 = sand.u32 %s157, 1
          %s464 = scalar_lea.sflag [#allocation4], %s463
          %s465 = sand.u32 %s157, 1
          %s466 = smul.addr %s465, 48
          %s467 = scalar_lea.vmem [#allocation5], %s466
          %469 = dma.done %s464, 768
        $region56: #{tpu_custom_call.1} parent=51 // pred_fallthru
          _
      $region52: #{tpu_custom_call.1} parent=5 // pred_fallthru
        _
    $region6: #{tpu_custom_call.1} parent=1 // loop_footer
      %s21 = sadd.s32 1, %s17
    $region7: #{tpu_custom_call.1} parent=1 // loop_footer_branch
      %16 = sbr.rel target = $region3
    $region8: #{tpu_custom_call.1} parent=1 // loop_exit
      _
    %470 = vsyncpa [#allocation3], 1
    %s471 = scalar_lea.sflag [#allocation3], 1
    %472 = vsyncpa %s471, 1
    %473 = vsyncpa [#allocation4], 1
    %s474 = scalar_lea.sflag [#allocation4], 1
    %475 = vsyncpa %s474, 1

// kernel: tpu_custom_call.1
$region0: #{tpu_custom_call.1}
  #allocation0 [shape = 'u32[]', space=smem, size = 0x4, offset = 0x4, fixed_abs, tag = 'smem constant byte address 0x4 - core index']
  #allocation1 [shape = 'u32[72,128]{1,0:T(1,128)}', space=vmem, size = 0x9000, scoped, tag = 'internal scratch']
  %s0 = inlined_call_operand.hbm [shape: f32[2,16,300], index: 0, kind: input, shape index: {}]
  %s1 = inlined_call_operand.vmem [shape: bf16[16,16], index: 1, kind: input, shape index: {}]
  %s2 = inlined_call_operand.vmem [shape: f32[16,1], index: 2, kind: input, shape index: {}]
  %s3 = inlined_call_operand.vmem [shape: bf16[16,16], index: 3, kind: input, shape index: {}]
  %s4 = inlined_call_operand.vmem [shape: f32[16,1], index: 4, kind: input, shape index: {}]
  %s5 = inlined_call_operand.hbm [shape: f32[2,16,300], index: 5, kind: output, shape index: {}]
  %s6 = sld [smem:[#allocation0]]
  $region57: #{tpu_custom_call.1} parent=0
    _
  %s8 = ssub.s32 1, %s6
  %s9 = scalar_select 0, %s8, %s6
  $region1: #{tpu_custom_call.1} parent=0
    #allocation2 [shape = 'u8[49152]{0}', space=vmem, size = 0xc000, scoped, tag = 'input window, operand 0']
    #allocation3 [shape = 's32[2]{0}', space=sflag, size = 0x8, scoped, tag = 'scoped memory for tpu_custom_call.1']
    #allocation4 [shape = 's32[2]{0}', space=sflag, size = 0x8, scoped, tag = 'scoped memory for tpu_custom_call.1']
    #allocation5 [shape = 'u8[49152]{0}', space=vmem, size = 0xc000, scoped, tag = 'output window, operand 0']
    %10 = vsyncpa [#allocation3], 0
    %s11 = scalar_lea.sflag [#allocation3], 1
    %12 = vsyncpa %s11, 0
    %13 = vsyncpa [#allocation4], 0
    %s14 = scalar_lea.sflag [#allocation4], 1
    %15 = vsyncpa %s14, 0
    loop: start=0, step=1, limit=4
    $region2: #{tpu_custom_call.1} parent=1 // loop_pre_header
      _
    $region3: #{tpu_custom_call.1} parent=1 // loop_header
      %s17 = sphi 0, %s21
      %p18 = scmp.ge.s32.totalorder %s17, 4
      %s24 = sphi 0, %s36
      %s25 = sphi 0, %s32
      %s26 = sphi 0, %s24
      %s27 = sphi 0, %s25
      %s28 = sphi 0, %s26
      %s29 = sphi 0, %s27
      %s41 = sphi 0, %s43
      %s44 = sphi 0, %s41
      %s45 = sphi 0, %s44
      %s61 = sphi 0, %s45
      %s65 = sphi 0, %s65
      %s67 = sphi 0, %s65
      %s68 = sphi 0, %s67
      %s82 = sphi 0, %s68
      %s86 = sphi 0, %s86
      %s88 = sphi 0, %s86
      %s89 = sphi 0, %s88
      %s103 = sphi 0, %s89
      %s107 = sphi 0, %s107
      %s109 = sphi 0, %s107
      %s110 = sphi 0, %s109
      %s124 = sphi 0, %s110
      %s128 = sphi 0, %s128
      %s130 = sphi 0, %s128
      %s131 = sphi 0, %s130
      %s145 = sphi 0, %s131
      %s153 = sphi 0, %s155
      %s156 = sphi 0, %s153
      %s157 = sphi 0, %s156
      %s173 = sphi 0, %s157
    $region4: #{tpu_custom_call.1} parent=1 // loop_header_branch
      %20 = sbr.rel (%p18) target = $region8
    $region5: #{tpu_custom_call.1} parent=1 // loop_body
      %s22 = ssub.s32 %s17, 1
      %s23 = ssub.s32 %s17, 2
      %s30 = sadd.s32 1, %s25
      %p31 = scmp.ge.s32.totalorder %s30, 1
      %s32 = scalar_select %p31, 0, %s30
      %s33 = sadd.s32 1, %s24
      %s34 = scalar_select %p31, %s33, %s24
      %p35 = scmp.ge.s32.totalorder %s34, 2
      %s36 = scalar_select %p35, 0, %s34
      %s37 = ssub.s32 %s24, %s36
      %s38 = ssub.s32 %s25, %s32
      %s39 = sor.u32 %s37, %s38
      %p40 = scmp.eq.s32.totalorder %s39, 0
      %s42 = sadd.s32 %s41, 1
      %s43 = scalar_select %p40, %s41, %s42
      %p46 = pneg %p40
      %p47 = scmp.eq.s32.totalorder %s17, 1
      %p48 = por %p46, %p47
      %p49 = scmp.ne.s32.totalorder %s41, %s44
      %p50 = scmp.eq.s32.totalorder %s17, 0
      %p51 = por %p49, %p50
      %p52 = scmp.ne.s32.totalorder %s41, %s44
      %p53 = scmp.eq.s32.totalorder %s22, 1
      %p54 = por %p52, %p53
      %p55 = scmp.ne.s32.totalorder %s44, %s45
      %p56 = scmp.eq.s32.totalorder %s22, 0
      %p57 = por %p55, %p56
      %p58 = scmp.ne.s32.totalorder %s44, %s45
      %p59 = scmp.eq.s32.totalorder %s23, 1
      %p60 = por %p58, %p59
      %p62 = scmp.ne.s32.totalorder %s45, %s61
      %p63 = scmp.eq.s32.totalorder %s23, 0
      %p64 = por %p62, %p63
      %s66 = sadd.s32 %s65, 1
      %p69 = scmp.eq.s32.totalorder %s17, 1
      %p70 = scmp.ne.s32.totalorder %s65, %s67
      %p71 = scmp.eq.s32.totalorder %s17, 0
      %p72 = por %p70, %p71
      %p73 = scmp.ne.s32.totalorder %s65, %s67
      %p74 = scmp.eq.s32.totalorder %s22, 1
      %p75 = por %p73, %p74
      %p76 = scmp.ne.s32.totalorder %s67, %s68
      %p77 = scmp.eq.s32.totalorder %s22, 0
      %p78 = por %p76, %p77
      %p79 = scmp.ne.s32.totalorder %s67, %s68
      %p80 = scmp.eq.s32.totalorder %s23, 1
      %p81 = por %p79, %p80
      %p83 = scmp.ne.s32.totalorder %s68, %s82
      %p84 = scmp.eq.s32.totalorder %s23, 0
      %p85 = por %p83, %p84
      %s87 = sadd.s32 %s86, 1
      %p90 = scmp.eq.s32.totalorder %s17, 1
      %p91 = scmp.ne.s32.totalorder %s86, %s88
      %p92 = scmp.eq.s32.totalorder %s17, 0
      %p93 = por %p91, %p92
      %p94 = scmp.ne.s32.totalorder %s86, %s88
      %p95 = scmp.eq.s32.totalorder %s22, 1
      %p96 = por %p94, %p95
      %p97 = scmp.ne.s32.totalorder %s88, %s89
      %p98 = scmp.eq.s32.totalorder %s22, 0
      %p99 = por %p97, %p98
      %p100 = scmp.ne.s32.totalorder %s88, %s89
      %p101 = scmp.eq.s32.totalorder %s23, 1
      %p102 = por %p100, %p101
      %p104 = scmp.ne.s32.totalorder %s89, %s103
      %p105 = scmp.eq.s32.totalorder %s23, 0
      %p106 = por %p104, %p105
      %s108 = sadd.s32 %s107, 1
      %p111 = scmp.eq.s32.totalorder %s17, 1
      %p112 = scmp.ne.s32.totalorder %s107, %s109
      %p113 = scmp.eq.s32.totalorder %s17, 0
      %p114 = por %p112, %p113
      %p115 = scmp.ne.s32.totalorder %s107, %s109
      %p116 = scmp.eq.s32.totalorder %s22, 1
      %p117 = por %p115, %p116
      %p118 = scmp.ne.s32.totalorder %s109, %s110
      %p119 = scmp.eq.s32.totalorder %s22, 0
      %p120 = por %p118, %p119
      %p121 = scmp.ne.s32.totalorder %s109, %s110
      %p122 = scmp.eq.s32.totalorder %s23, 1
      %p123 = por %p121, %p122
      %p125 = scmp.ne.s32.totalorder %s110, %s124
      %p126 = scmp.eq.s32.totalorder %s23, 0
      %p127 = por %p125, %p126
      %s129 = sadd.s32 %s128, 1
      %p132 = scmp.eq.s32.totalorder %s17, 1
      %p133 = scmp.ne.s32.totalorder %s128, %s130
      %p134 = scmp.eq.s32.totalorder %s17, 0
      %p135 = por %p133, %p134
      %p136 = scmp.ne.s32.totalorder %s128, %s130
      %p137 = scmp.eq.s32.totalorder %s22, 1
      %p138 = por %p136, %p137
      %p139 = scmp.ne.s32.totalorder %s130, %s131
      %p140 = scmp.eq.s32.totalorder %s22, 0
      %p141 = por %p139, %p140
      %p142 = scmp.ne.s32.totalorder %s130, %s131
      %p143 = scmp.eq.s32.totalorder %s23, 1
      %p144 = por %p142, %p143
      %p146 = scmp.ne.s32.totalorder %s131, %s145
      %p147 = scmp.eq.s32.totalorder %s23, 0
      %p148 = por %p146, %p147
      %s149 = ssub.s32 %s24, %s36
      %s150 = ssub.s32 %s25, %s32
      %s151 = sor.u32 %s149, %s150
      %p152 = scmp.eq.s32.totalorder %s151, 0
      %s154 = sadd.s32 %s153, 1
      %s155 = scalar_select %p152, %s153, %s154
      %p158 = pneg %p152
      %p159 = scmp.eq.s32.totalorder %s17, 1
      %p160 = por %p158, %p159
      %p161 = scmp.ne.s32.totalorder %s153, %s156
      %p162 = scmp.eq.s32.totalorder %s17, 0
      %p163 = por %p161, %p162
      %p164 = scmp.ne.s32.totalorder %s153, %s156
      %p165 = scmp.eq.s32.totalorder %s22, 1
      %p166 = por %p164, %p165
      %p167 = scmp.ne.s32.totalorder %s156, %s157
      %p168 = scmp.eq.s32.totalorder %s22, 0
      %p169 = por %p167, %p168
      %p170 = scmp.ne.s32.totalorder %s156, %s157
      %p171 = scmp.eq.s32.totalorder %s23, 1
      %p172 = por %p170, %p171
      %p174 = scmp.ne.s32.totalorder %s157, %s173
      %p175 = scmp.eq.s32.totalorder %s23, 0
      %p176 = por %p174, %p175
      %p177 = scmp.le.s32.totalorder 1, %s17
      %p178 = scmp.lt.s32.totalorder %s17, 3
      %p179 = pnand %p177, %p178
      %p180 = pneg %p179
      // Predicated region
      $region9: #{tpu_custom_call.1} parent=5 // pred_check
        _
      $region10: #{tpu_custom_call.1} parent=5 // pred_check_branch
        %182 = sbr.rel (%p179) target = $region12
      $region11: #{tpu_custom_call.1} parent=5 // pred_region
        %s183 = ssub.s32 %s17, 1
        // Predicated region
        $region13: #{tpu_custom_call.1} parent=11 // pred_check
          %p184 = pneg %p78
        $region14: #{tpu_custom_call.1} parent=11 // pred_check_branch
          %186 = sbr.rel (%p184) target = $region16
        $region15: #{tpu_custom_call.1} parent=11 // pred_region
          _
        $region16: #{tpu_custom_call.1} parent=11 // pred_fallthru
          _
        // Predicated region
        $region17: #{tpu_custom_call.1} parent=11 // pred_check
          %p187 = pneg %p99
        $region18: #{tpu_custom_call.1} parent=11 // pred_check_branch
          %189 = sbr.rel (%p187) target = $region20
        $region19: #{tpu_custom_call.1} parent=11 // pred_region
          _
        $region20: #{tpu_custom_call.1} parent=11 // pred_fallthru
          _
        // Predicated region
        $region21: #{tpu_custom_call.1} parent=11 // pred_check
          %p190 = pneg %p120
        $region22: #{tpu_custom_call.1} parent=11 // pred_check_branch
          %192 = sbr.rel (%p190) target = $region24
        $region23: #{tpu_custom_call.1} parent=11 // pred_region
          _
        $region24: #{tpu_custom_call.1} parent=11 // pred_fallthru
          _
        // Predicated region
        $region25: #{tpu_custom_call.1} parent=11 // pred_check
          %p193 = pneg %p141
        $region26: #{tpu_custom_call.1} parent=11 // pred_check_branch
          %195 = sbr.rel (%p193) target = $region28
        $region27: #{tpu_custom_call.1} parent=11 // pred_region
          _
        $region28: #{tpu_custom_call.1} parent=11 // pred_fallthru
          _
      $region12: #{tpu_custom_call.1} parent=5 // pred_fallthru
        _
      %p196 = scmp.lt.s32.totalorder %s17, 2
      // Predicated region
      $region29: #{tpu_custom_call.1} parent=5 // pred_check
        %p197 = pneg %p196
      $region30: #{tpu_custom_call.1} parent=5 // pred_check_branch
        %199 = sbr.rel (%p197) target = $region32
      $region31: #{tpu_custom_call.1} parent=5 // pred_region
        // Predicated region
        $region33: #{tpu_custom_call.1} parent=31 // pred_check
          %p200 = pneg %p51
        $region34: #{tpu_custom_call.1} parent=31 // pred_check_branch
          %202 = sbr.rel (%p200) target = $region36
        $region35: #{tpu_custom_call.1} parent=31 // pred_region
          %s203 = sand.u32 %s41, 1
          %s204 = scalar_lea.sflag [#allocation3], %s203
          %s205 = sand.u32 %s41, 1
          %s206 = smul.addr %s205, 48
          %s207 = scalar_lea.vmem [#allocation2], %s206
          %s208 = smul.u32 3, %s25
          %210 = vsyncadd %s204, 0
          %s211 = smul.addr %s24, 6
          %s212 = sadd.s32 %s208, %s211
          %s213 = smul.addr %s212, 8
          %s214 = scalar_lea.hbm %s0, %s213
          %s215 = sshll.u32 %s214, 4
          %s216 = int_to_ptr.hbm [resolvable:$true] %s215
          %s217 = sshll.u32 %s207, 4
          %s218 = int_to_ptr.vmem [resolvable:$true] %s217
          %223 = dma.hbm_to_vmem [thread:$0]  %s216, 768, %s218, %s204, 384, 384, 24
        $region36: #{tpu_custom_call.1} parent=31 // pred_fallthru
          _
      $region32: #{tpu_custom_call.1} parent=5 // pred_fallthru
        _
      %p224 = scmp.le.s32.totalorder 1, %s17
      %p225 = scmp.lt.s32.totalorder %s17, 3
      %p226 = pnand %p224, %p225
      %p227 = pneg %p226
      // Predicated region
      $region37: #{tpu_custom_call.1} parent=5 // pred_check
        _
      $region38: #{tpu_custom_call.1} parent=5 // pred_check_branch
        %229 = sbr.rel (%p226) target = $region40
      $region39: #{tpu_custom_call.1} parent=5 // pred_region
        %s230 = ssub.s32 %s17, 1
        %s231 = sand.u32 %s44, 1
        %s232 = scalar_lea.sflag [#allocation3], %s231
        %s233 = sand.u32 %s44, 1
        %s234 = smul.addr %s233, 48
        %s235 = scalar_lea.vmem [#allocation2], %s234
        // Predicated region
        $region41: #{tpu_custom_call.1} parent=39 // pred_check
          %p236 = pneg %p57
        $region42: #{tpu_custom_call.1} parent=39 // pred_check_branch
          %238 = sbr.rel (%p236) target = $region44
        $region43: #{tpu_custom_call.1} parent=39 // pred_region
          %240 = dma.done %s232, 768
        $region44: #{tpu_custom_call.1} parent=39 // pred_fallthru
          _
        %s241 = sand.u32 %s44, 1
        %s242 = scalar_lea.sflag [#allocation3], %s241
        %s243 = sand.u32 %s44, 1
        %s244 = smul.addr %s243, 48
        %s245 = scalar_lea.vmem [#allocation2], %s244
        %p246 = pneg %p57
        %p247 = pneg %p54
        %p248 = pneg %p78
        %p249 = pneg %p75
        %p250 = pneg %p99
        %p251 = pneg %p96
        %p252 = pneg %p120
        %p253 = pneg %p117
        %p254 = pneg %p141
        %p255 = pneg %p138
        %p256 = pneg %p169
        %p257 = pneg %p166
        %s258 = sand.u32 %s156, 1
        %s259 = scalar_lea.sflag [#allocation4], %s258
        %s260 = sand.u32 %s156, 1
        %s261 = smul.addr %s260, 48
        %s262 = scalar_lea.vmem [#allocation5], %s261
        %s263 = smul.u32 3, %s27
        %s264 = smul.u32 3, %s27
        %v266 = vld [vmem:[%s1] sm:$0xf]
        %v267 = vld [vmem:[%s1 + $0x4] sm:$0xf]
        %v268 = vld [vmem:[%s235] sm:$0xff]
        %v269 = vld [vmem:[%s235 + $0x8] sm:$0xff]
        %v270 = vld [vmem:[%s235 + $0x10] sm:$0xff]
        %v271 = vld [vmem:[%s235 + $0x18] sm:$0xff]
        %v272 = vld [vmem:[%s235 + $0x20] sm:$0xff]
        %v273 = vld [vmem:[%s235 + $0x28] sm:$0xff]
        %v274 = vpack.c.bf16 %v271, %v268
        %v275 = vpack.c.bf16 %v272, %v269
        %v276 = vpack.c.bf16 %v273, %v270
        %v277 = vld [vmem:[%s2] sm:$0xff]
        %v278 = vld [vmem:[%s2 + $0x8] sm:$0xff]
        %280 = vset.pattern.permute.xlu0 0
        %281 = vperm.xlu0 %280, %v277
        %v282 = vpop.permute.xlu0 %281
        %285 = vset.pattern.permute.xlu0 0
        %286 = vperm.xlu0 %285, %v278
        %v287 = vpop.permute.xlu0 %286
        %v291 = vunpack.c.l.b16 %v266
        %v292 = vunpack.c.l.b16 %v267
        %v293 = vpack.c.b16 %v292, %v291
        %vm294 = vcmask 130048
        %v296 = vsel %vm294, %v293, 0
        %298 = vmatpush.bf16.msra.mxu0 0
        %299 = vmatpush.bf16.msra.mxu0 0
        %300 = vmatpush.bf16.msra.mxu0 0
        %301 = vmatpush.bf16.msra.mxu0 0
        %302 = vmatpush.bf16.msra.mxu0 0
        %303 = vmatpush.bf16.msra.mxu0 0
        %304 = vmatpush.bf16.msra.mxu0 0
        %305 = vmatpush.bf16.msra.mxu0 %v274
        %306 = vmatmul.bf16.gmra.mxu0 %v296
        %v307 = vpop.f32.mrf.mxu0
        %v308 = vadd.f32 %v282, %v307
        %v309 = vpop.f32.mrf.mxu0
        %v310 = vadd.f32 %v287, %v309
        %311 = vdwg.mxu0
        %312 = vmatpush.bf16.msra.mxu0 0
        %313 = vmatpush.bf16.msra.mxu0 0
        %314 = vmatpush.bf16.msra.mxu0 0
        %315 = vmatpush.bf16.msra.mxu0 0
        %316 = vmatpush.bf16.msra.mxu0 0
        %317 = vmatpush.bf16.msra.mxu0 0
        %318 = vmatpush.bf16.msra.mxu0 0
        %319 = vmatpush.bf16.msra.mxu0 %v275
        %320 = vmatmul.bf16.gmra.mxu0 %v296
        %v321 = vpop.f32.mrf.mxu0
        %v322 = vadd.f32 %v282, %v321
        %v323 = vpop.f32.mrf.mxu0
        %v324 = vadd.f32 %v287, %v323
        %325 = vdwg.mxu0
        %326 = vmatpush.bf16.msra.mxu0 0
        %327 = vmatpush.bf16.msra.mxu0 0
        %328 = vmatpush.bf16.msra.mxu0 0
        %329 = vmatpush.bf16.msra.mxu0 0
        %330 = vmatpush.bf16.msra.mxu0 0
        %331 = vmatpush.bf16.msra.mxu0 0
        %332 = vmatpush.bf16.msra.mxu0 0
        %333 = vmatpush.bf16.msra.mxu0 %v276
        %334 = vmatmul.bf16.gmra.mxu0 %v296
        %v335 = vpop.f32.mrf.mxu0
        %v336 = vadd.f32 %v282, %v335
        %v337 = vpop.f32.mrf.mxu0
        %v338 = vadd.f32 %v287, %v337
        %339 = vdwg.mxu0
        %v340 = vmax.f32 %v308, 0.0
        %v341 = vmax.f32 %v322, 0.0
        %v342 = vmax.f32 %v336, 0.0
        %v343 = vmax.f32 %v310, 0.0
        %v344 = vmax.f32 %v324, 0.0
        %v345 = vmax.f32 %v338, 0.0
        %v346 = vld [vmem:[%s3] sm:$0xf]
        %v347 = vld [vmem:[%s3 + $0x4] sm:$0xf]
        %v348 = vpack.c.bf16 %v343, %v340
        %v349 = vpack.c.bf16 %v344, %v341
        %v350 = vpack.c.bf16 %v345, %v342
        %v351 = vld [vmem:[%s4] sm:$0xff]
        %v352 = vld [vmem:[%s4 + $0x8] sm:$0xff]
        %354 = vset.pattern.permute.xlu0 0
        %355 = vperm.xlu0 %354, %v351
        %v356 = vpop.permute.xlu0 %355
        %359 = vset.pattern.permute.xlu0 0
        %360 = vperm.xlu0 %359, %v352
        %v361 = vpop.permute.xlu0 %360
        %v365 = vunpack.c.l.b16 %v346
        %v366 = vunpack.c.l.b16 %v347
        %v367 = vpack.c.b16 %v366, %v365
        %v369 = vsel %vm294, %v367, 0
        %371 = vmatpush.bf16.msra.mxu0 0
        %372 = vmatpush.bf16.msra.mxu0 0
        %373 = vmatpush.bf16.msra.mxu0 0
        %374 = vmatpush.bf16.msra.mxu0 0
        %375 = vmatpush.bf16.msra.mxu0 0
        %376 = vmatpush.bf16.msra.mxu0 0
        %377 = vmatpush.bf16.msra.mxu0 0
        %378 = vmatpush.bf16.msra.mxu0 %v348
        %379 = vmatmul.bf16.gmra.mxu0 %v369
        %v380 = vpop.f32.mrf.mxu0
        %v381 = vadd.f32 %v356, %v380
        %v382 = vpop.f32.mrf.mxu0
        %v383 = vadd.f32 %v361, %v382
        %384 = vdwg.mxu0
        %385 = vmatpush.bf16.msra.mxu0 0
        %386 = vmatpush.bf16.msra.mxu0 0
        %387 = vmatpush.bf16.msra.mxu0 0
        %388 = vmatpush.bf16.msra.mxu0 0
        %389 = vmatpush.bf16.msra.mxu0 0
        %390 = vmatpush.bf16.msra.mxu0 0
        %391 = vmatpush.bf16.msra.mxu0 0
        %392 = vmatpush.bf16.msra.mxu0 %v349
        %393 = vmatmul.bf16.gmra.mxu0 %v369
        %v394 = vpop.f32.mrf.mxu0
        %v395 = vadd.f32 %v356, %v394
        %v396 = vpop.f32.mrf.mxu0
        %v397 = vadd.f32 %v361, %v396
        %398 = vdwg.mxu0
        %399 = vmatpush.bf16.msra.mxu0 0
        %400 = vmatpush.bf16.msra.mxu0 0
        %401 = vmatpush.bf16.msra.mxu0 0
        %402 = vmatpush.bf16.msra.mxu0 0
        %403 = vmatpush.bf16.msra.mxu0 0
        %404 = vmatpush.bf16.msra.mxu0 0
        %405 = vmatpush.bf16.msra.mxu0 0
        %406 = vmatpush.bf16.msra.mxu0 %v350
        %407 = vmatmul.bf16.gmra.mxu0 %v369
        %v408 = vpop.f32.mrf.mxu0
        %v409 = vadd.f32 %v356, %v408
        %v410 = vpop.f32.mrf.mxu0
        %v411 = vadd.f32 %v361, %v410
        %412 = vdwg.mxu0
        %v413 = vadd.f32 %v381, %v268
        %v414 = vadd.f32 %v395, %v269
        %v415 = vadd.f32 %v409, %v270
        %v416 = vadd.f32 %v383, %v271
        %v417 = vadd.f32 %v397, %v272
        %v418 = vadd.f32 %v411, %v273
        %v419 = vmax.f32 %v413, 0.0
        %v420 = vmax.f32 %v414, 0.0
        %v421 = vmax.f32 %v415, 0.0
        %v422 = vmax.f32 %v416, 0.0
        %v423 = vmax.f32 %v417, 0.0
        %v424 = vmax.f32 %v418, 0.0
        %425 = vst [vmem:[%s262] sm:$0xff] %v419
        %426 = vst [vmem:[%s262 + $0x8] sm:$0xff] %v420
        %427 = vst [vmem:[%s262 + $0x10] sm:$0xff] %v421
        %428 = vst [vmem:[%s262 + $0x18] sm:$0xff] %v422
        %429 = vst [vmem:[%s262 + $0x20] sm:$0xff] %v423
        %430 = vst [vmem:[%s262 + $0x28] sm:$0xff] %v424
        %s431 = sand.u32 %s156, 1
        %s432 = scalar_lea.sflag [#allocation4], %s431
        %s433 = sand.u32 %s156, 1
        %s434 = smul.addr %s433, 48
        %s435 = scalar_lea.vmem [#allocation5], %s434
        // Predicated region
        $region45: #{tpu_custom_call.1} parent=39 // pred_check
          %p436 = pneg %p166
        $region46: #{tpu_custom_call.1} parent=39 // pred_check_branch
          %438 = sbr.rel (%p436) target = $region48
        $region47: #{tpu_custom_call.1} parent=39 // pred_region
          %s439 = smul.u32 3, %s27
          %441 = vsyncadd %s432, 0
          %s442 = smul.addr %s26, 6
          %s443 = sadd.s32 %s439, %s442
          %s444 = smul.addr %s443, 8
          %s445 = scalar_lea.hbm %s5, %s444
          %s446 = sshll.u32 %s435, 4
          %s447 = int_to_ptr.vmem [resolvable:$true] %s446
          %s448 = sshll.u32 %s445, 4
          %s449 = int_to_ptr.hbm [resolvable:$true] %s448
          %454 = dma.vmem_to_hbm [thread:$0]  %s447, 768, %s449, %s432, 384, 384, 24
        $region48: #{tpu_custom_call.1} parent=39 // pred_fallthru
          _
      $region40: #{tpu_custom_call.1} parent=5 // pred_fallthru
        _
      %p455 = scmp.le.s32.totalorder 2, %s17
      // Predicated region
      $region49: #{tpu_custom_call.1} parent=5 // pred_check
        %p456 = pneg %p455
      $region50: #{tpu_custom_call.1} parent=5 // pred_check_branch
        %458 = sbr.rel (%p456) target = $region52
      $region51: #{tpu_custom_call.1} parent=5 // pred_region
        %s459 = ssub.s32 %s17, 2
        // Predicated region
        $region53: #{tpu_custom_call.1} parent=51 // pred_check
          %p460 = pneg %p172
        $region54: #{tpu_custom_call.1} parent=51 // pred_check_branch
          %462 = sbr.rel (%p460) target = $region56
        $region55: #{tpu_custom_call.1} parent=51 // pred_region
          %s463 = sand.u32 %s157, 1
          %s464 = scalar_lea.sflag [#allocation4], %s463
          %s465 = sand.u32 %s157, 1
          %s466 = smul.addr %s465, 48
          %s467 = scalar_lea.vmem [#allocation5], %s466
          %469 = dma.done %s464, 768
        $region56: #{tpu_custom_call.1} parent=51 // pred_fallthru
          _
      $region52: #{tpu_custom_call.1} parent=5 // pred_fallthru
        _
    $region6: #{tpu_custom_call.1} parent=1 // loop_footer
      %s21 = sadd.s32 1, %s17
    $region7: #{tpu_custom_call.1} parent=1 // loop_footer_branch
      %16 = sbr.rel target = $region3
    $region8: #{tpu_custom_call.1} parent=1 // loop_exit
      _
    %470 = vsyncpa [#allocation3], 1
    %s471 = scalar_lea.sflag [#allocation3], 1
    %472 = vsyncpa %s471, 1
    %473 = vsyncpa [#allocation4], 1
    %s474 = scalar_lea.sflag [#allocation4], 1
    %475 = vsyncpa %s474, 1

</llo_original>
